<compile_context>
chip_gen: v6e
topology: v6e:2x2x1
jax: 0.10.0
libtpu: 0.0.40
codegen_flags: <defaults>
</compile_context>

<pallas_src>
import functools

import numpy as np
import jax
import jax.numpy as jnp
from jax.experimental import pallas as pl
from jax.experimental.pallas import tpu as pltpu


def _vmem_capacity_bytes():
    """Physical VMEM per TensorCore; conservative fallback if the query fails."""
    try:
        info = pltpu.get_tpu_info()
        cap = getattr(info, "vmem_capacity_bytes", None)
        if cap:
            return int(cap)
    except Exception:
        pass
    return 64 * 1024 * 1024            # v7x-sized fallback (safe everywhere)


def _plan_tiling(C, B, s_itemsize, q_itemsize, budget_bytes):
    """Pick (tile_c, teacher_resident) so the double-buffered streamed set fits."""
    # Cost of a single full-C tile: student chunk + both teacher chunks,
    # each double-buffered by the Pallas pipeline.
    full_cost = 2 * B * C * s_itemsize + 4 * B * C * q_itemsize
    if C % 128 != 0 or full_cost <= budget_bytes:
        # Lane-unaligned C cannot be tiled (block last dim must be a multiple
        # of 128 or the full axis) -> single full-C tile.
        # TODO(synk): non-128-multiple C with huge B*C may still exceed VMEM.
        return C, False
    # Tile along C.  Keep the two (small) teacher-softmax chunks resident
    # across the C loop if they fit in half the budget; stream only the student.
    teacher_resident = 4 * B * C * q_itemsize <= budget_bytes // 2
    remaining = budget_bytes - (4 * B * C * q_itemsize if teacher_resident else 0)
    per_lane = 2 * B * s_itemsize + (0 if teacher_resident else 4 * B * q_itemsize)
    cap = max(128, (remaining // max(per_lane, 1)) // 128 * 128)
    tile_c = 128
    for cand in range(int(cap), 127, -128):
        if C % cand == 0:
            tile_c = cand
            break
    return tile_c, teacher_resident


def _distill_kernel(s_ref, q0_ref, q1_ref, out_ref,
                    m_sc, l_sc, d0_sc, d1_sc, *,
                    inv_student_temp, num_c_tiles, tile_c, batch, teacher_sliced):
    """Grid = (student chunk v, class tile j).

    Per student chunk v the log-sum-exp of s_v/T_s over classes is computed
    once (shared by both teacher chunks), together with the two dot products
    sum_c q_iq * s_v.  At the last class tile it emits

        loss_v = sum_{iq in {0,1}, iq != v}  mean_b( lse_b - dot_{iq,b} )

    into a lane-dense (1, 8, 128) output block.
    """
    v = pl.program_id(0)
    j = pl.program_id(1)

    s = s_ref[0].astype(jnp.float32) * inv_student_temp          # (B, tile_c)

    if teacher_sliced:
        # Teacher chunks are resident as full-C blocks; slice the current tile.
        c0 = pl.multiple_of(j * tile_c, 128)
        q0 = q0_ref[:, pl.ds(c0, tile_c)].astype(jnp.float32)
        q1 = q1_ref[:, pl.ds(c0, tile_c)].astype(jnp.float32)
    else:
        q0 = q0_ref[...].astype(jnp.float32)
        q1 = q1_ref[...].astype(jnp.float32)

    dot0 = jnp.sum(q0 * s, axis=-1, keepdims=True)               # (B, 1)
    dot1 = jnp.sum(q1 * s, axis=-1, keepdims=True)               # (B, 1)

    def emit(lse, d0, d1):
        ce0 = jnp.sum(lse - d0) * (1.0 / batch)                  # mean over batch
        ce1 = jnp.sum(lse - d1) * (1.0 / batch)
        w0 = jnp.where(v != 0, 1.0, 0.0)                         # skip iq == v
        w1 = jnp.where(v != 1, 1.0, 0.0)
        out_ref[...] = jnp.full(out_ref.shape, w0 * ce0 + w1 * ce1, out_ref.dtype)

    if num_c_tiles == 1:
        # Single class tile: plain (non-online) log-softmax statistics.
        m = jnp.max(s, axis=-1, keepdims=True)
        l = jnp.sum(jnp.exp(s - m), axis=-1, keepdims=True)
        emit(m + jnp.log(l), dot0, dot1)
    else:
        @pl.when(j == 0)
        def _init():
            m_sc[...] = jnp.full_like(m_sc, -jnp.inf)
            l_sc[...] = jnp.zeros_like(l_sc)
            d0_sc[...] = jnp.zeros_like(d0_sc)
            d1_sc[...] = jnp.zeros_like(d1_sc)

        d0_sc[...] += dot0
        d1_sc[...] += dot1

        # Online softmax statistics (running max / rescaled running sum of exp).
        m_prev = m_sc[...]
        m_new = jnp.maximum(m_prev, jnp.max(s, axis=-1, keepdims=True))
        l_sc[...] = (l_sc[...] * jnp.exp(m_prev - m_new)
                     + jnp.sum(jnp.exp(s - m_new), axis=-1, keepdims=True))
        m_sc[...] = m_new

        @pl.when(j == num_c_tiles - 1)
        def _finalize():
            emit(m_sc[...] + jnp.log(l_sc[...]), d0_sc[...], d1_sc[...])


class DistillLoss:
    """JAX/Pallas port of the PyTorch DistillLoss module (forward pass)."""

    def __init__(self, warmup_teacher_temp_epochs, nepochs, ncrops=2,
                 warmup_teacher_temp=0.07, teacher_temp=0.04, student_temp=0.1):
        self.student_temp = student_temp
        self.ncrops = ncrops
        self.teacher_temp_schedule = np.concatenate((
            np.linspace(warmup_teacher_temp, teacher_temp, warmup_teacher_temp_epochs),
            np.ones(nepochs - warmup_teacher_temp_epochs) * teacher_temp,
        ))

    def __call__(self, student_output, teacher_output, epoch, *,
                 tile_c=None, teacher_dtype=None, teacher_resident=None,
                 core_parallel=False):
        ncrops = self.ncrops
        total_s, C = student_output.shape
        total_t, Ct = teacher_output.shape
        assert C == Ct
        B = total_t // 2                        # teacher is chunked into 2 pieces
        assert total_s == ncrops * B and total_t == 2 * B
        n_loss_terms = 2 * (ncrops - 1)

        # Teacher softmax (epoch-dependent temperature): tiny (2B, C) tensor,
        # computed once in f32 (so sum_c q == 1 holds for the folded CE).
        # Optionally stored narrower (e.g. bf16) to halve its HBM traffic.
        temp = float(self.teacher_temp_schedule[epoch])
        q = jax.nn.softmax(teacher_output.astype(jnp.float32) / temp, axis=-1)
        if teacher_dtype is not None:
            q = q.astype(teacher_dtype)
        q0, q1 = q[:B], q[B:]                   # (B, C) each
        student_r = student_output.reshape(ncrops, B, C)

        s_isz = jnp.dtype(student_output.dtype).itemsize
        q_isz = jnp.dtype(q.dtype).itemsize

        # Generation-aware VMEM budget (64 MiB/TC on v7x, 128 MiB on v5e/v6e).
        vmem_cap = _vmem_capacity_bytes()
        budget = vmem_cap // 4

        plan_tc, plan_resident = _plan_tiling(C, B, s_isz, q_isz, budget)
        if tile_c is None:
            tile_c = plan_tc
        assert C % tile_c == 0, (C, tile_c)
        num_c_tiles = C // tile_c
        if teacher_resident is None:
            teacher_resident = plan_resident
        teacher_sliced = bool(teacher_resident) and num_c_tiles > 1

        kernel = functools.partial(
            _distill_kernel,
            inv_student_temp=float(1.0 / self.student_temp),
            num_c_tiles=num_c_tiles, tile_c=tile_c, batch=B,
            teacher_sliced=teacher_sliced)

        if teacher_sliced:
            # Full-C teacher blocks, constant index map -> fetched once, resident.
            q_specs = [pl.BlockSpec((B, C), lambda v, j: (0, 0)),
                       pl.BlockSpec((B, C), lambda v, j: (0, 0))]
            q_block_c = C
        else:
            q_specs = [pl.BlockSpec((B, tile_c), lambda v, j: (0, j)),
                       pl.BlockSpec((B, tile_c), lambda v, j: (0, j))]
            q_block_c = tile_c

        # VMEM request: streamed/resident input buffers + small fixed slack for
        # the output block, (B,1) scratch and compiler-internal scratch.
        est_vmem = (2 * B * tile_c * s_isz          # student chunk, double-buffered
                    + 4 * B * q_block_c * q_isz     # 2 teacher chunks x 2 buffers
                    + (2 << 20))
        vmem_limit = int(min(max(est_vmem, 8 << 20), vmem_cap - (8 << 20)))

        if core_parallel:
            dim_sem = (pltpu.CORE_PARALLEL, pltpu.ARBITRARY)
        else:
            dim_sem = ("parallel", "arbitrary")

        out = pl.pallas_call(
            kernel,
            out_shape=jax.ShapeDtypeStruct((ncrops, 8, 128), jnp.float32),
            grid_spec=pltpu.PrefetchScalarGridSpec(
                num_scalar_prefetch=0,
                grid=(ncrops, num_c_tiles),
                in_specs=[
                    # student chunk v, class tile j
                    pl.BlockSpec((1, B, tile_c), lambda v, j: (v, 0, j)),
                    q_specs[0],                 # teacher softmax chunk 0
                    q_specs[1],                 # teacher softmax chunk 1
                ],
                out_specs=pl.BlockSpec((1, 8, 128), lambda v, j: (v, 0, 0)),
                scratch_shapes=[pltpu.VMEM((B, 1), jnp.float32)] * 4,
            ),
            compiler_params=pltpu.CompilerParams(
                dimension_semantics=dim_sem,
                vmem_limit_bytes=vmem_limit),
        )(student_r, q0, q1)

        return jnp.sum(out[:, 0, 0]) / n_loss_terms


def _reference(student_output, teacher_output, epoch, loss_mod):
    """Pure-JAX reference matching the PyTorch forward."""
    ncrops = loss_mod.ncrops
    B = teacher_output.shape[0] // 2
    student_out = student_output / loss_mod.student_temp
    student_chunks = [student_out[i * B:(i + 1) * B] for i in range(ncrops)]
    temp = float(loss_mod.teacher_temp_schedule[epoch])
    teacher_out = jax.nn.softmax(teacher_output / temp, axis=-1)
    teacher_chunks = [teacher_out[i * B:(i + 1) * B] for i in range(2)]
    total, n = 0.0, 0
    for iq, qc in enumerate(teacher_chunks):
        for v in range(len(student_chunks)):
            if v == iq:
                continue
            loss = jnp.sum(-qc * jax.nn.log_softmax(student_chunks[v], axis=-1), axis=-1)
            total = total + loss.mean()
            n += 1
    return total / n


if __name__ == "__main__":
    epoch = 3
    key = jax.random.PRNGKey(0)
    k1, k2 = jax.random.split(key)

    # Case 1: small TPU-tile-friendly shapes, ncrops=2, single C tile (fast path).
    ncrops, B, C = 2, 8, 128
    student_output = jax.random.normal(k1, (ncrops * B, C), dtype=jnp.float32)
    teacher_output = jax.random.normal(k2, (2 * B, C), dtype=jnp.float32)
    loss_mod = DistillLoss(warmup_teacher_temp_epochs=5, nepochs=20, ncrops=ncrops)
    out = jax.block_until_ready(loss_mod(student_output, teacher_output, epoch))
    ref = jax.block_until_ready(_reference(student_output, teacher_output, epoch, loss_mod))
    assert np.allclose(np.asarray(out), np.asarray(ref), rtol=2e-5, atol=2e-5), (out, ref)

    # Case 2: ncrops=4, forced C tiling, resident (sliced) teacher blocks —
    # exercises the online softmax across C tiles + in-kernel pl.ds slicing.
    ncrops2, B2, C2 = 4, 8, 384
    k3, k4 = jax.random.split(k2)
    student2 = jax.random.normal(k3, (ncrops2 * B2, C2), dtype=jnp.float32)
    teacher2 = jax.random.normal(k4, (2 * B2, C2), dtype=jnp.float32)
    loss_mod2 = DistillLoss(warmup_teacher_temp_epochs=5, nepochs=20, ncrops=ncrops2)
    out2 = jax.block_until_ready(
        loss_mod2(student2, teacher2, epoch, tile_c=128, teacher_resident=True))
    ref2 = jax.block_until_ready(_reference(student2, teacher2, epoch, loss_mod2))
    assert np.allclose(np.asarray(out2), np.asarray(ref2), rtol=2e-5, atol=2e-5), (out2, ref2)

    # Case 3: same data, forced C tiling with streamed (tiled) teacher blocks.
    out3 = jax.block_until_ready(
        loss_mod2(student2, teacher2, epoch, tile_c=128, teacher_resident=False))
    assert np.allclose(np.asarray(out3), np.asarray(ref2), rtol=2e-5, atol=2e-5), (out3, ref2)

    # Case 4: bf16-stored teacher softmax (halves teacher HBM traffic); loose
    # tolerance against the f32 reference because of bf16 rounding of q.
    out4 = jax.block_until_ready(
        loss_mod(student_output, teacher_output, epoch, teacher_dtype=jnp.bfloat16))
    assert np.allclose(np.asarray(out4), np.asarray(ref), rtol=5e-2, atol=5e-2), (out4, ref)

    print("KERNEL_OK")
</pallas_src>

<mosaic_0001>
module attributes {stable_mosaic.version = 11 : i64} {
  func.func @_distill_kernel(%arg0: i32, %arg1: i32, %arg2: memref<1x8x128xf32, #tpu.memory_space<vmem>>, %arg3: memref<8x128xf32, #tpu.memory_space<vmem>>, %arg4: memref<8x128xf32, #tpu.memory_space<vmem>>, %arg5: memref<1x8x128xf32, #tpu.memory_space<vmem>>, %arg6: memref<8x1xf32, #tpu.memory_space<vmem>>, %arg7: memref<8x1xf32, #tpu.memory_space<vmem>>, %arg8: memref<8x1xf32, #tpu.memory_space<vmem>>, %arg9: memref<8x1xf32, #tpu.memory_space<vmem>>) attributes {dimension_semantics = [#tpu.dimension_semantics<parallel>, #tpu.dimension_semantics<arbitrary>], iteration_bounds = array<i64: 2, 1>, scalar_prefetch = 0 : i64, scratch_operands = 4 : i64, tpu.core_type = #tpu.core_type<tc>, window_params = [{transform_indices = @transform_0, window_bounds = array<i64: 1, 8, 128>}, {transform_indices = @transform_1, window_bounds = array<i64: 8, 128>}, {transform_indices = @transform_2, window_bounds = array<i64: 8, 128>}, {transform_indices = @transform_3, window_bounds = array<i64: 1, 8, 128>}]} {
    %c0 = arith.constant 0 : index
    %c0_0 = arith.constant 0 : index
    %c0_1 = arith.constant 0 : index
    %0 = vector.load %arg2[%c0, %c0_0, %c0_1] : memref<1x8x128xf32, #tpu.memory_space<vmem>>, vector<1x8x128xf32>
    %1 = vector.shape_cast %0 : vector<1x8x128xf32> to vector<8x128xf32>
    %cst = arith.constant 1.000000e+01 : f32
    %2 = vector.broadcast %cst : f32 to vector<8x128xf32>
    %3 = arith.mulf %1, %2 : vector<8x128xf32>
    %c0_2 = arith.constant 0 : index
    %c0_3 = arith.constant 0 : index
    %4 = vector.load %arg3[%c0_2, %c0_3] : memref<8x128xf32, #tpu.memory_space<vmem>>, vector<8x128xf32>
    %c0_4 = arith.constant 0 : index
    %c0_5 = arith.constant 0 : index
    %5 = vector.load %arg4[%c0_4, %c0_5] : memref<8x128xf32, #tpu.memory_space<vmem>>, vector<8x128xf32>
    %6 = arith.mulf %4, %3 : vector<8x128xf32>
    %cst_6 = arith.constant dense<0.000000e+00> : vector<8xf32>
    %7 = vector.multi_reduction <add>, %6, %cst_6 [1] : vector<8x128xf32> to vector<8xf32>
    %8 = vector.shape_cast %7 : vector<8xf32> to vector<8x1xf32>
    %9 = arith.mulf %5, %3 : vector<8x128xf32>
    %cst_7 = arith.constant dense<0.000000e+00> : vector<8xf32>
    %10 = vector.multi_reduction <add>, %9, %cst_7 [1] : vector<8x128xf32> to vector<8xf32>
    %11 = vector.shape_cast %10 : vector<8xf32> to vector<8x1xf32>
    %cst_8 = arith.constant dense<0xFF800000> : vector<8xf32>
    %12 = vector.multi_reduction <maximumf>, %3, %cst_8 [1] : vector<8x128xf32> to vector<8xf32>
    %13 = vector.shape_cast %12 : vector<8xf32> to vector<8x1xf32>
    %14 = vector.broadcast %13 : vector<8x1xf32> to vector<8x128xf32>
    %15 = arith.subf %3, %14 : vector<8x128xf32>
    %16 = math.exp %15 : vector<8x128xf32>
    %cst_9 = arith.constant dense<0.000000e+00> : vector<8xf32>
    %17 = vector.multi_reduction <add>, %16, %cst_9 [1] : vector<8x128xf32> to vector<8xf32>
    %18 = vector.shape_cast %17 : vector<8xf32> to vector<8x1xf32>
    %19 = math.log %18 : vector<8x1xf32>
    %20 = arith.addf %13, %19 : vector<8x1xf32>
    %21 = arith.subf %20, %8 : vector<8x1xf32>
    %22 = vector.shape_cast %21 : vector<8x1xf32> to vector<1x8x1xf32>
    %cst_10 = arith.constant dense<0.000000e+00> : vector<1xf32>
    %23 = vector.multi_reduction <add>, %22, %cst_10 [1, 2] : vector<1x8x1xf32> to vector<1xf32>
    %24 = vector.shape_cast %23 : vector<1xf32> to vector<1x1x1xf32>
    %25 = vector.extract %24[0, 0, 0] : f32 from vector<1x1x1xf32>
    %cst_11 = arith.constant 1.250000e-01 : f32
    %26 = arith.mulf %25, %cst_11 : f32
    %27 = arith.subf %20, %11 : vector<8x1xf32>
    %28 = vector.shape_cast %27 : vector<8x1xf32> to vector<1x8x1xf32>
    %cst_12 = arith.constant dense<0.000000e+00> : vector<1xf32>
    %29 = vector.multi_reduction <add>, %28, %cst_12 [1, 2] : vector<1x8x1xf32> to vector<1xf32>
    %30 = vector.shape_cast %29 : vector<1xf32> to vector<1x1x1xf32>
    %31 = vector.extract %30[0, 0, 0] : f32 from vector<1x1x1xf32>
    %cst_13 = arith.constant 1.250000e-01 : f32
    %32 = arith.mulf %31, %cst_13 : f32
    %c0_i32 = arith.constant 0 : i32
    %33 = arith.cmpi ne, %arg0, %c0_i32 : i32
    %cst_14 = arith.constant 1.000000e+00 : f32
    %cst_15 = arith.constant 0.000000e+00 : f32
    %34 = arith.select %33, %cst_14, %cst_15 : f32
    %c1_i32 = arith.constant 1 : i32
    %35 = arith.cmpi ne, %arg0, %c1_i32 : i32
    %cst_16 = arith.constant 1.000000e+00 : f32
    %cst_17 = arith.constant 0.000000e+00 : f32
    %36 = arith.select %35, %cst_16, %cst_17 : f32
    %37 = arith.mulf %34, %26 : f32
    %38 = arith.mulf %36, %32 : f32
    %39 = arith.addf %37, %38 : f32
    %40 = vector.broadcast %39 : f32 to vector<1x8x128xf32>
    %c0_18 = arith.constant 0 : index
    %c0_19 = arith.constant 0 : index
    %c0_20 = arith.constant 0 : index
    %41 = vector.load %arg5[%c0_18, %c0_19, %c0_20] : memref<1x8x128xf32, #tpu.memory_space<vmem>>, vector<1x8x128xf32>
    tpu.vector_store %arg5[%c0_18, %c0_19, %c0_20], %40 {strides = array<i32>} : memref<1x8x128xf32, #tpu.memory_space<vmem>>, vector<1x8x128xf32>,
    return
  }
  func.func @transform_0(%arg0: i32, %arg1: i32) -> (i32, i32, i32) {
    %c0_i32 = arith.constant 0 : i32
    %c0_i32_0 = arith.constant 0 : i32
    return %arg0, %c0_i32, %arg1 : i32, i32, i32
  }
  func.func @transform_1(%arg0: i32, %arg1: i32) -> (i32, i32) {
    %c0_i32 = arith.constant 0 : i32
    %c0_i32_0 = arith.constant 0 : i32
    return %c0_i32, %arg1 : i32, i32
  }
  func.func @transform_2(%arg0: i32, %arg1: i32) -> (i32, i32) {
    %c0_i32 = arith.constant 0 : i32
    %c0_i32_0 = arith.constant 0 : i32
    return %c0_i32, %arg1 : i32, i32
  }
  func.func @transform_3(%arg0: i32, %arg1: i32) -> (i32, i32, i32) {
    %c0_i32 = arith.constant 0 : i32
    %c0_i32_0 = arith.constant 0 : i32
    %c0_i32_1 = arith.constant 0 : i32
    return %arg0, %c0_i32, %c0_i32_0 : i32, i32, i32
  }
}

</mosaic_0001>

<llo_original>
// kernel: tpu_custom_call.1
$region0: #{tpu_custom_call.1}
  #allocation0 [shape = 'u32[]', space=smem, size = 0x4, offset = 0x4, fixed_abs, tag = 'smem constant byte address 0x4 - core index']
  #allocation1 [shape = 'u32[144,128]{1,0:T(1,128)}', space=vmem, size = 0x12000, scoped, tag = 'internal scratch']
  #allocation2 [shape = 'f32[8,1]{1,0:T(8,128)}', space=vmem, size = 0x1000, scoped, tag = 'scratch operand']
  #allocation3 [shape = 'f32[8,1]{1,0:T(8,128)}', space=vmem, size = 0x1000, scoped, tag = 'scratch operand']
  #allocation4 [shape = 'f32[8,1]{1,0:T(8,128)}', space=vmem, size = 0x1000, scoped, tag = 'scratch operand']
  #allocation5 [shape = 'f32[8,1]{1,0:T(8,128)}', space=vmem, size = 0x1000, scoped, tag = 'scratch operand']
  %s0 = inlined_call_operand.hbm [shape: f32[2,8,128], index: 0, kind: input, shape index: {}]
  %s1 = inlined_call_operand.hbm [shape: f32[8,128], index: 1, kind: input, shape index: {}]
  %s2 = inlined_call_operand.hbm [shape: f32[8,128], index: 2, kind: input, shape index: {}]
  %s3 = inlined_call_operand.hbm [shape: f32[2,8,128], index: 3, kind: output, shape index: {}]
  %s4 = sld [smem:[#allocation0]]
  $region57: #{tpu_custom_call.1} parent=0
    _
  %s6 = ssub.s32 1, %s4
  %s7 = scalar_select 0, %s6, %s4
  $region1: #{tpu_custom_call.1} parent=0
    #allocation6 [shape = 'u8[8192]{0}', space=vmem, size = 0x2000, scoped, tag = 'input window, operand 0']
    #allocation7 [shape = 's32[2]{0}', space=sflag, size = 0x8, scoped, tag = 'scoped memory for tpu_custom_call.1']
    #allocation8 [shape = 's32[2]{0}', space=sflag, size = 0x8, scoped, tag = 'scoped memory for tpu_custom_call.1']
    #allocation9 [shape = 'u8[4096]{0}', space=vmem, size = 0x1000, scoped, tag = 'input window, operand 1, single buffered']
    #allocation10 [shape = 's32[1]{0}', space=sflag, size = 0x4, scoped, tag = 'scoped memory for tpu_custom_call.1']
    #allocation11 [shape = 'u8[4096]{0}', space=vmem, size = 0x1000, scoped, tag = 'input window, operand 2, single buffered']
    #allocation12 [shape = 'u8[8192]{0}', space=vmem, size = 0x2000, scoped, tag = 'output window, operand 0']
    %8 = vsyncpa [#allocation7], 0
    %s9 = scalar_lea.sflag [#allocation7], 1
    %10 = vsyncpa %s9, 0
    %11 = vsyncpa [#allocation10], 0
    %12 = vsyncpa [#allocation8], 0
    %s13 = scalar_lea.sflag [#allocation8], 1
    %14 = vsyncpa %s13, 0
    loop: start=0, step=1, limit=4
    $region2: #{tpu_custom_call.1} parent=1 // loop_pre_header
      _
    $region3: #{tpu_custom_call.1} parent=1 // loop_header
      %s16 = sphi 0, %s20
      %p17 = scmp.ge.s32.totalorder %s16, 4
      %s23 = sphi 0, %s35
      %s24 = sphi 0, %s31
      %s25 = sphi 0, %s23
      %s26 = sphi 0, %s24
      %s27 = sphi 0, %s25
      %s28 = sphi 0, %s26
      %s40 = sphi 0, %s42
      %s43 = sphi 0, %s40
      %s44 = sphi 0, %s43
      %s60 = sphi 0, %s44
      %s66 = sphi 0, %s68
      %s69 = sphi 0, %s66
      %s70 = sphi 0, %s69
      %s86 = sphi 0, %s70
      %s92 = sphi 0, %s94
      %s95 = sphi 0, %s92
      %s96 = sphi 0, %s95
      %s112 = sphi 0, %s96
      %s118 = sphi 0, %s120
      %s121 = sphi 0, %s118
      %s122 = sphi 0, %s121
      %s138 = sphi 0, %s122
    $region4: #{tpu_custom_call.1} parent=1 // loop_header_branch
      %19 = sbr.rel (%p17) target = $region8
    $region5: #{tpu_custom_call.1} parent=1 // loop_body
      %s21 = ssub.s32 %s16, 1
      %s22 = ssub.s32 %s16, 2
      %s29 = sadd.s32 1, %s24
      %p30 = scmp.ge.s32.totalorder %s29, 1
      %s31 = scalar_select %p30, 0, %s29
      %s32 = sadd.s32 1, %s23
      %s33 = scalar_select %p30, %s32, %s23
      %p34 = scmp.ge.s32.totalorder %s33, 2
      %s35 = scalar_select %p34, 0, %s33
      %s36 = ssub.s32 %s23, %s35
      %s37 = ssub.s32 %s24, %s31
      %s38 = sor.u32 %s36, %s37
      %p39 = scmp.eq.s32.totalorder %s38, 0
      %s41 = sadd.s32 %s40, 1
      %s42 = scalar_select %p39, %s40, %s41
      %p45 = pneg %p39
      %p46 = scmp.eq.s32.totalorder %s16, 1
      %p47 = por %p45, %p46
      %p48 = scmp.ne.s32.totalorder %s40, %s43
      %p49 = scmp.eq.s32.totalorder %s16, 0
      %p50 = por %p48, %p49
      %p51 = scmp.ne.s32.totalorder %s40, %s43
      %p52 = scmp.eq.s32.totalorder %s21, 1
      %p53 = por %p51, %p52
      %p54 = scmp.ne.s32.totalorder %s43, %s44
      %p55 = scmp.eq.s32.totalorder %s21, 0
      %p56 = por %p54, %p55
      %p57 = scmp.ne.s32.totalorder %s43, %s44
      %p58 = scmp.eq.s32.totalorder %s22, 1
      %p59 = por %p57, %p58
      %p61 = scmp.ne.s32.totalorder %s44, %s60
      %p62 = scmp.eq.s32.totalorder %s22, 0
      %p63 = por %p61, %p62
      %s64 = ssub.s32 %s24, %s31
      %p65 = scmp.eq.s32.totalorder %s64, 0
      %s67 = sadd.s32 %s66, 1
      %s68 = scalar_select %p65, %s66, %s67
      %p71 = pneg %p65
      %p72 = scmp.eq.s32.totalorder %s16, 1
      %p73 = por %p71, %p72
      %p74 = scmp.ne.s32.totalorder %s66, %s69
      %p75 = scmp.eq.s32.totalorder %s16, 0
      %p76 = por %p74, %p75
      %p77 = scmp.ne.s32.totalorder %s66, %s69
      %p78 = scmp.eq.s32.totalorder %s21, 1
      %p79 = por %p77, %p78
      %p80 = scmp.ne.s32.totalorder %s69, %s70
      %p81 = scmp.eq.s32.totalorder %s21, 0
      %p82 = por %p80, %p81
      %p83 = scmp.ne.s32.totalorder %s69, %s70
      %p84 = scmp.eq.s32.totalorder %s22, 1
      %p85 = por %p83, %p84
      %p87 = scmp.ne.s32.totalorder %s70, %s86
      %p88 = scmp.eq.s32.totalorder %s22, 0
      %p89 = por %p87, %p88
      %s90 = ssub.s32 %s24, %s31
      %p91 = scmp.eq.s32.totalorder %s90, 0
      %s93 = sadd.s32 %s92, 1
      %s94 = scalar_select %p91, %s92, %s93
      %p97 = pneg %p91
      %p98 = scmp.eq.s32.totalorder %s16, 1
      %p99 = por %p97, %p98
      %p100 = scmp.ne.s32.totalorder %s92, %s95
      %p101 = scmp.eq.s32.totalorder %s16, 0
      %p102 = por %p100, %p101
      %p103 = scmp.ne.s32.totalorder %s92, %s95
      %p104 = scmp.eq.s32.totalorder %s21, 1
      %p105 = por %p103, %p104
      %p106 = scmp.ne.s32.totalorder %s95, %s96
      %p107 = scmp.eq.s32.totalorder %s21, 0
      %p108 = por %p106, %p107
      %p109 = scmp.ne.s32.totalorder %s95, %s96
      %p110 = scmp.eq.s32.totalorder %s22, 1
      %p111 = por %p109, %p110
      %p113 = scmp.ne.s32.totalorder %s96, %s112
      %p114 = scmp.eq.s32.totalorder %s22, 0
      %p115 = por %p113, %p114
      %s116 = ssub.s32 %s23, %s35
      %p117 = scmp.eq.s32.totalorder %s116, 0
      %s119 = sadd.s32 %s118, 1
      %s120 = scalar_select %p117, %s118, %s119
      %p123 = pneg %p117
      %p124 = scmp.eq.s32.totalorder %s16, 1
      %p125 = por %p123, %p124
      %p126 = scmp.ne.s32.totalorder %s118, %s121
      %p127 = scmp.eq.s32.totalorder %s16, 0
      %p128 = por %p126, %p127
      %p129 = scmp.ne.s32.totalorder %s118, %s121
      %p130 = scmp.eq.s32.totalorder %s21, 1
      %p131 = por %p129, %p130
      %p132 = scmp.ne.s32.totalorder %s121, %s122
      %p133 = scmp.eq.s32.totalorder %s21, 0
      %p134 = por %p132, %p133
      %p135 = scmp.ne.s32.totalorder %s121, %s122
      %p136 = scmp.eq.s32.totalorder %s22, 1
      %p137 = por %p135, %p136
      %p139 = scmp.ne.s32.totalorder %s122, %s138
      %p140 = scmp.eq.s32.totalorder %s22, 0
      %p141 = por %p139, %p140
      %p142 = scmp.le.s32.totalorder 1, %s16
      %p143 = scmp.lt.s32.totalorder %s16, 3
      %p144 = pnand %p142, %p143
      %p145 = pneg %p144
      // Predicated region
      $region9: #{tpu_custom_call.1} parent=5 // pred_check
        _
      $region10: #{tpu_custom_call.1} parent=5 // pred_check_branch
        %147 = sbr.rel (%p144) target = $region12
      $region11: #{tpu_custom_call.1} parent=5 // pred_region
        %s148 = ssub.s32 %s16, 1
        // Predicated region
        $region13: #{tpu_custom_call.1} parent=11 // pred_check
          %p149 = pneg %p82
        $region14: #{tpu_custom_call.1} parent=11 // pred_check_branch
          %151 = sbr.rel (%p149) target = $region16
        $region15: #{tpu_custom_call.1} parent=11 // pred_region
          %s153 = ssub.s32 128, 128
          %154 = vsyncadd [#allocation10], %s153
          %s155 = smul.addr %s26, 128
          %s156 = scalar_lea.hbm %s1, %s155
          %s158 = sshll.u32 [#allocation9], 4
          %s159 = int_to_ptr.vmem [resolvable:$true] %s158
          %161 = dma.hbm_to_vmem [thread:$0]  %s156, 128, %s159, [#allocation10]
        $region16: #{tpu_custom_call.1} parent=11 // pred_fallthru
          _
        // Predicated region
        $region17: #{tpu_custom_call.1} parent=11 // pred_check
          %p162 = pneg %p108
        $region18: #{tpu_custom_call.1} parent=11 // pred_check_branch
          %164 = sbr.rel (%p162) target = $region20
        $region19: #{tpu_custom_call.1} parent=11 // pred_region
          %s166 = ssub.s32 128, 128
          %167 = vsyncadd [#allocation10], %s166
          %s168 = smul.addr %s26, 128
          %s169 = scalar_lea.hbm %s2, %s168
          %s171 = sshll.u32 [#allocation11], 4
          %s172 = int_to_ptr.vmem [resolvable:$true] %s171
          %174 = dma.hbm_to_vmem [thread:$0]  %s169, 128, %s172, [#allocation10]
        $region20: #{tpu_custom_call.1} parent=11 // pred_fallthru
          _
      $region12: #{tpu_custom_call.1} parent=5 // pred_fallthru
        _
      %p175 = scmp.lt.s32.totalorder %s16, 2
      // Predicated region
      $region21: #{tpu_custom_call.1} parent=5 // pred_check
        %p176 = pneg %p175
      $region22: #{tpu_custom_call.1} parent=5 // pred_check_branch
        %178 = sbr.rel (%p176) target = $region24
      $region23: #{tpu_custom_call.1} parent=5 // pred_region
        // Predicated region
        $region25: #{tpu_custom_call.1} parent=23 // pred_check
          %p179 = pneg %p50
        $region26: #{tpu_custom_call.1} parent=23 // pred_check_branch
          %181 = sbr.rel (%p179) target = $region28
        $region27: #{tpu_custom_call.1} parent=23 // pred_region
          %s182 = sand.u32 %s40, 1
          %s183 = scalar_lea.sflag [#allocation7], %s182
          %s184 = sand.u32 %s40, 1
          %s185 = smul.addr %s184, 8
          %s186 = scalar_lea.vmem [#allocation6], %s185
          %s188 = ssub.s32 128, 128
          %189 = vsyncadd %s183, %s188
          %s190 = sadd.s32 %s24, %s23
          %s191 = smul.addr %s190, 128
          %s192 = scalar_lea.hbm %s0, %s191
          %s194 = sshll.u32 %s186, 4
          %s195 = int_to_ptr.vmem [resolvable:$true] %s194
          %197 = dma.hbm_to_vmem [thread:$0]  %s192, 128, %s195, %s183
        $region28: #{tpu_custom_call.1} parent=23 // pred_fallthru
          _
      $region24: #{tpu_custom_call.1} parent=5 // pred_fallthru
        _
      %p198 = scmp.le.s32.totalorder 1, %s16
      %p199 = scmp.lt.s32.totalorder %s16, 3
      %p200 = pnand %p198, %p199
      %p201 = pneg %p200
      // Predicated region
      $region29: #{tpu_custom_call.1} parent=5 // pred_check
        _
      $region30: #{tpu_custom_call.1} parent=5 // pred_check_branch
        %203 = sbr.rel (%p200) target = $region32
      $region31: #{tpu_custom_call.1} parent=5 // pred_region
        %s204 = ssub.s32 %s16, 1
        %s205 = sand.u32 %s43, 1
        %s206 = scalar_lea.sflag [#allocation7], %s205
        %s207 = sand.u32 %s43, 1
        %s208 = smul.addr %s207, 8
        %s209 = scalar_lea.vmem [#allocation6], %s208
        // Predicated region
        $region33: #{tpu_custom_call.1} parent=31 // pred_check
          %p210 = pneg %p56
        $region34: #{tpu_custom_call.1} parent=31 // pred_check_branch
          %212 = sbr.rel (%p210) target = $region36
        $region35: #{tpu_custom_call.1} parent=31 // pred_region
          %213 = dma.done %s206, 128
        $region36: #{tpu_custom_call.1} parent=31 // pred_fallthru
          _
        // Predicated region
        $region37: #{tpu_custom_call.1} parent=31 // pred_check
          %p214 = pneg %p82
        $region38: #{tpu_custom_call.1} parent=31 // pred_check_branch
          %216 = sbr.rel (%p214) target = $region40
        $region39: #{tpu_custom_call.1} parent=31 // pred_region
          %217 = dma.done [#allocation10], 128
        $region40: #{tpu_custom_call.1} parent=31 // pred_fallthru
          _
        // Predicated region
        $region41: #{tpu_custom_call.1} parent=31 // pred_check
          %p218 = pneg %p108
        $region42: #{tpu_custom_call.1} parent=31 // pred_check_branch
          %220 = sbr.rel (%p218) target = $region44
        $region43: #{tpu_custom_call.1} parent=31 // pred_region
          %221 = dma.done [#allocation10], 128
        $region44: #{tpu_custom_call.1} parent=31 // pred_fallthru
          _
        %s222 = sand.u32 %s43, 1
        %s223 = scalar_lea.sflag [#allocation7], %s222
        %s224 = sand.u32 %s43, 1
        %s225 = smul.addr %s224, 8
        %s226 = scalar_lea.vmem [#allocation6], %s225
        %p227 = pneg %p56
        %p228 = pneg %p53
        %p229 = pneg %p82
        %p230 = pneg %p79
        %p231 = pneg %p108
        %p232 = pneg %p105
        %p233 = pneg %p134
        %p234 = pneg %p131
        %s235 = sand.u32 %s121, 1
        %s236 = scalar_lea.sflag [#allocation8], %s235
        %s237 = sand.u32 %s121, 1
        %s238 = smul.addr %s237, 8
        %s239 = scalar_lea.vmem [#allocation12], %s238
        %v240 = vld [vmem:[%s209] sm:$0xff]
        %v241 = vmul.f32 %v240, 10.0
        %v242 = vld [vmem:[#allocation9] sm:$0xff]
        %v243 = vld [vmem:[#allocation11] sm:$0xff]
        %v244 = vmul.f32 %v242, %v241
        %245 = vadd.xlane.f32.xlu0 %v244
        %v246 = vpop.xlane.xlu0 %245
        %v247 = vmul.f32 %v243, %v241
        %248 = vadd.xlane.f32.xlu0 %v247
        %v249 = vpop.xlane.xlu0 %248
        %250 = vmax.xlane.f32.xlu0 %v241
        %v251 = vpop.xlane.xlu0 %250
        %v252 = vsub.f32 %v241, %v251
        %v253 = vmul.f32 %v252, 1.442695
        %v254 = vpow.pop %v253
        %255 = vadd.xlane.f32.xlu0 %v254
        %v256 = vpop.xlane.xlu0 %255
        %v257 = vlog2.pop %v256
        %v258 = vmul.f32 %v257, 0.6931472
        %v259 = vadd.f32 %v251, %v258
        %v260 = vsub.f32 %v259, %v246
        %vm261 = vcmask 7168
        %v262 = vsel %vm261, %v260, 0.0
        %263 = vadd.xlane.f32.xlu0 %v262
        %v264 = vpop.xlane.xlu0 %263
        %v265 = vrot.slane %v264, 4
        %v266 = vadd.f32 %v264, %v265
        %v267 = vrot.slane %v266, 2
        %v268 = vadd.f32 %v266, %v267
        %v269 = vrot.slane %v268, 1
        %v270 = vadd.f32 %v268, %v269
        %s271 = vtos %v270
        %s272 = smul.f32 %s271, 0.125
        %v273 = vsub.f32 %v259, %v249
        %v274 = vsel %vm261, %v273, 0.0
        %275 = vadd.xlane.f32.xlu0 %v274
        %v276 = vpop.xlane.xlu0 %275
        %v277 = vrot.slane %v276, 4
        %v278 = vadd.f32 %v276, %v277
        %v279 = vrot.slane %v278, 2
        %v280 = vadd.f32 %v278, %v279
        %v281 = vrot.slane %v280, 1
        %v282 = vadd.f32 %v280, %v281
        %s283 = vtos %v282
        %s284 = smul.f32 %s283, 0.125
        %p285 = scmp.ne.s32.totalorder %s25, 0
        %s286 = scalar_select %p285, 1.0, 0.0
        %p287 = scmp.ne.s32.totalorder %s25, 1
        %s288 = scalar_select %p287, 1.0, 0.0
        %s289 = smul.f32 %s286, %s272
        %s290 = smul.f32 %s288, %s284
        %s291 = sadd.f32 %s289, %s290
        %v292 = vstv %s291
        %293 = vst [vmem:[%s239] sm:$0xff] %v292
        %s294 = sand.u32 %s121, 1
        %s295 = scalar_lea.sflag [#allocation8], %s294
        %s296 = sand.u32 %s121, 1
        %s297 = smul.addr %s296, 8
        %s298 = scalar_lea.vmem [#allocation12], %s297
        // Predicated region
        $region45: #{tpu_custom_call.1} parent=31 // pred_check
          %p299 = pneg %p131
        $region46: #{tpu_custom_call.1} parent=31 // pred_check_branch
          %301 = sbr.rel (%p299) target = $region48
        $region47: #{tpu_custom_call.1} parent=31 // pred_region
          %s303 = ssub.s32 128, 128
          %304 = vsyncadd %s295, %s303
          %s305 = smul.addr %s25, 128
          %s306 = scalar_lea.hbm %s3, %s305
          %s308 = sshll.u32 %s298, 4
          %s309 = int_to_ptr.vmem [resolvable:$true] %s308
          %311 = dma.vmem_to_hbm [thread:$0]  %s309, 128, %s306, %s295
        $region48: #{tpu_custom_call.1} parent=31 // pred_fallthru
          _
      $region32: #{tpu_custom_call.1} parent=5 // pred_fallthru
        _
      %p312 = scmp.le.s32.totalorder 2, %s16
      // Predicated region
      $region49: #{tpu_custom_call.1} parent=5 // pred_check
        %p313 = pneg %p312
      $region50: #{tpu_custom_call.1} parent=5 // pred_check_branch
        %315 = sbr.rel (%p313) target = $region52
      $region51: #{tpu_custom_call.1} parent=5 // pred_region
        %s316 = ssub.s32 %s16, 2
        // Predicated region
        $region53: #{tpu_custom_call.1} parent=51 // pred_check
          %p317 = pneg %p137
        $region54: #{tpu_custom_call.1} parent=51 // pred_check_branch
          %319 = sbr.rel (%p317) target = $region56
        $region55: #{tpu_custom_call.1} parent=51 // pred_region
          %s320 = sand.u32 %s122, 1
          %s321 = scalar_lea.sflag [#allocation8], %s320
          %s322 = sand.u32 %s122, 1
          %s323 = smul.addr %s322, 8
          %s324 = scalar_lea.vmem [#allocation12], %s323
          %325 = dma.done %s321, 128
        $region56: #{tpu_custom_call.1} parent=51 // pred_fallthru
          _
      $region52: #{tpu_custom_call.1} parent=5 // pred_fallthru
        _
    $region6: #{tpu_custom_call.1} parent=1 // loop_footer
      %s20 = sadd.s32 1, %s16
    $region7: #{tpu_custom_call.1} parent=1 // loop_footer_branch
      %15 = sbr.rel target = $region3
    $region8: #{tpu_custom_call.1} parent=1 // loop_exit
      _
    %326 = vsyncpa [#allocation7], 1
    %s327 = scalar_lea.sflag [#allocation7], 1
    %328 = vsyncpa %s327, 1
    %329 = vsyncpa [#allocation10], 1
    %330 = vsyncpa [#allocation8], 1
    %s331 = scalar_lea.sflag [#allocation8], 1
    %332 = vsyncpa %s331, 1

</llo_original>
